<compile_context>
chip_gen: v7x
topology: tpu7x:2x2x1
jax: 0.10.0
libtpu: 0.0.40
codegen_flags: <defaults>
</compile_context>

<pallas_src>
import math

import jax
import jax.numpy as jnp
from jax.experimental import pallas as pl
from jax.experimental.pallas import tpu as pltpu


def _critic_kernel(x_ref, w1_ref, b1_ref, w2_ref, b2_ref, w3_ref, b3_ref,
                   out_ref):
    # fc1: bf16 MXU matmul, f32 accumulation; bias + ReLU in f32.
    # (K = input_dim under-fills the systolic depth but padding K would not
    # make it faster -- budget MXU time as ~ fc1 + fc2.)
    h1 = jnp.dot(x_ref[...], w1_ref[...], preferred_element_type=jnp.float32)
    h1 = jnp.maximum(h1 + b1_ref[...], 0.0)

    # fc2: cast activation to bf16 for the MXU, accumulate in f32.
    h2 = jnp.dot(h1.astype(jnp.bfloat16), w2_ref[...],
                 preferred_element_type=jnp.float32)
    h2 = jnp.maximum(h2 + b2_ref[...], 0.0)

    # fc3 (output_dim == 1): VPU multiply + reduction instead of an MXU matmul
    # with a single output column.  Fold 128-lane-aligned halves on the VPU
    # first so the XLU cross-lane reduce only sees one vreg width of lanes.
    p = h2 * w3_ref[...]
    width = p.shape[-1]
    while width > 128 and width % 256 == 0:
        half = width // 2
        p = p[:, :half] + p[:, half:]
        width = half
    v = jnp.sum(p, axis=-1, keepdims=True) + b3_ref[0, 0]
    out_ref[...] = v.astype(out_ref.dtype)


def _round_up(n, m):
    return ((n + m - 1) // m) * m


def _cdiv(a, b):
    return (a + b - 1) // b


def _select_tile(batch, tile_m):
    """Pick (tm, grid, padded_batch) minimizing padding waste.

    grid is forced >= 2 for batch >= 32 so the "parallel" batch axis can shard
    across v7x's two TensorCores (no-op on single-TC v5e/v6e).
    """
    grid = _cdiv(batch, tile_m)
    if batch >= 32:
        grid = max(grid, 2)
    tm = _round_up(_cdiv(batch, grid), 16)   # 16-row aligned (bf16 sublanes)
    grid = _cdiv(batch, tm)
    return tm, grid, grid * tm


def critic_forward(x, params, tile_m=2048):
    """x: [B, input_dim] float32. Returns value: [B, 1] float32."""
    w1, b1, w2, b2, w3, b3 = params
    B, input_dim = x.shape
    hidden = w1.shape[1]

    tm, grid_m, b_pad = _select_tile(B, tile_m)

    # Cast MXU operands to bf16 once, outside the kernel.
    x_in = x.astype(jnp.bfloat16)
    if b_pad != B:
        x_in = jnp.pad(x_in, ((0, b_pad - B), (0, 0)))
    w1b = w1.astype(jnp.bfloat16)
    w2b = w2.astype(jnp.bfloat16)
    w3_row = w3.reshape(1, hidden).astype(jnp.float32)  # [hidden,1] -> [1,hidden]

    out = pl.pallas_call(
        _critic_kernel,
        out_shape=jax.ShapeDtypeStruct((b_pad, 1), jnp.float32),
        grid=(grid_m,),
        in_specs=[
            # x tile marches along the batch axis (double-buffered by Pallas).
            pl.BlockSpec((tm, input_dim), lambda i: (i, 0)),
            # Weights / biases: constant index_map -> VMEM-resident across steps.
            pl.BlockSpec((input_dim, hidden), lambda i: (0, 0)),
            pl.BlockSpec((1, hidden), lambda i: (0, 0)),
            pl.BlockSpec((hidden, hidden), lambda i: (0, 0)),
            pl.BlockSpec((1, hidden), lambda i: (0, 0)),
            pl.BlockSpec((1, hidden), lambda i: (0, 0)),
            # b3 is a single scalar -> SMEM, no VMEM tile / DMA descriptor.
            pl.BlockSpec(memory_space=pltpu.MemorySpace.SMEM),
        ],
        out_specs=pl.BlockSpec((tm, 1), lambda i: (i, 0)),
        compiler_params=pltpu.CompilerParams(
            dimension_semantics=("parallel",)),
    )(x_in, w1b, b1, w2b, b2, w3_row, b3)

    return out[:B]


def init_critic_params(key, input_dim, hidden_dim=256, output_dim=1):
    """Deterministic init mimicking PyTorch nn.Linear default
    (uniform(-1/sqrt(fan_in), 1/sqrt(fan_in))). Params kept in f32."""
    assert output_dim == 1
    keys = jax.random.split(key, 6)

    def linear(kw, kb, fan_in, fan_out):
        bound = 1.0 / math.sqrt(fan_in)
        # store weight as [in, out] so the kernel computes x @ W
        w = jax.random.uniform(kw, (fan_in, fan_out), jnp.float32,
                               minval=-bound, maxval=bound)
        b = jax.random.uniform(kb, (1, fan_out), jnp.float32,
                               minval=-bound, maxval=bound)
        return w, b

    w1, b1 = linear(keys[0], keys[1], input_dim, hidden_dim)
    w2, b2 = linear(keys[2], keys[3], hidden_dim, hidden_dim)
    w3, b3 = linear(keys[4], keys[5], hidden_dim, output_dim)
    return (w1, b1, w2, b2, w3, b3)


def critic_reference_f32(x, params):
    """Pure-JAX f32 reference (matches the PyTorch module)."""
    w1, b1, w2, b2, w3, b3 = params
    h1 = jnp.maximum(x @ w1 + b1, 0.0)
    h2 = jnp.maximum(h1 @ w2 + b2, 0.0)
    return h2 @ w3 + b3


def critic_reference_bf16(x, params):
    """Pure-JAX reference with the same bf16-operand / f32-accum recipe."""
    w1, b1, w2, b2, w3, b3 = params
    h1 = jnp.dot(x.astype(jnp.bfloat16), w1.astype(jnp.bfloat16),
                 preferred_element_type=jnp.float32)
    h1 = jnp.maximum(h1 + b1, 0.0)
    h2 = jnp.dot(h1.astype(jnp.bfloat16), w2.astype(jnp.bfloat16),
                 preferred_element_type=jnp.float32)
    h2 = jnp.maximum(h2 + b2, 0.0)
    return h2 @ w3 + b3


if __name__ == "__main__":
    key = jax.random.PRNGKey(0)
    k_params, k_x = jax.random.split(key)

    input_dim = 32
    hidden_dim = 256
    output_dim = 1

    params = init_critic_params(k_params, input_dim, hidden_dim, output_dim)

    # Cover: tiny batch (grid forced to 2 steps, no padding), small batch with
    # padding (100 -> 2 x 64), and a medium batch with minimal-padding tile
    # selection (300 -> 2 x 160).
    for batch in (32, 100, 300):
        x = jax.random.normal(jax.random.fold_in(k_x, batch),
                              (batch, input_dim), jnp.float32)

        value = critic_forward(x, params)
        jax.block_until_ready(value)
        assert value.shape == (batch, output_dim)

        # Tight check vs. a reference using the same bf16/f32 recipe.
        ref_bf16 = critic_reference_bf16(x, params)
        assert jnp.allclose(value, ref_bf16, atol=1e-3, rtol=1e-3)

        # Loose check vs. the pure-f32 PyTorch-equivalent reference
        # (bf16 operands => ~1e-2 relative error is expected).
        ref_f32 = critic_reference_f32(x, params)
        assert jnp.allclose(value, ref_f32, atol=5e-2, rtol=5e-2)

    print("KERNEL_OK")
</pallas_src>

<mosaic_0001>
module attributes {stable_mosaic.version = 11 : i64} {
  func.func @_critic_kernel(%arg0: i32, %arg1: memref<16x32xbf16, #tpu.memory_space<vmem>>, %arg2: memref<32x256xbf16, #tpu.memory_space<vmem>>, %arg3: memref<1x256xf32, #tpu.memory_space<vmem>>, %arg4: memref<256x256xbf16, #tpu.memory_space<vmem>>, %arg5: memref<1x256xf32, #tpu.memory_space<vmem>>, %arg6: memref<1x256xf32, #tpu.memory_space<vmem>>, %arg7: memref<1x1xf32, #tpu.memory_space<smem>>, %arg8: memref<16x1xf32, #tpu.memory_space<vmem>>) attributes {dimension_semantics = [#tpu.dimension_semantics<parallel>], iteration_bounds = array<i64: 2>, scalar_prefetch = 0 : i64, scratch_operands = 0 : i64, tpu.core_type = #tpu.core_type<tc>, window_params = [{transform_indices = @transform_0, window_bounds = array<i64: 16, 32>}, {pipeline_mode = #tpu.pipeline_mode<synchronous>, transform_indices = @transform_1, window_bounds = array<i64: 32, 256>}, {pipeline_mode = #tpu.pipeline_mode<synchronous>, transform_indices = @transform_2, window_bounds = array<i64: 1, 256>}, {pipeline_mode = #tpu.pipeline_mode<synchronous>, transform_indices = @transform_3, window_bounds = array<i64: 256, 256>}, {pipeline_mode = #tpu.pipeline_mode<synchronous>, transform_indices = @transform_4, window_bounds = array<i64: 1, 256>}, {pipeline_mode = #tpu.pipeline_mode<synchronous>, transform_indices = @transform_5, window_bounds = array<i64: 1, 256>}, {transform_indices = @transform_6, window_bounds = array<i64: 1, 1>}, {transform_indices = @transform_7, window_bounds = array<i64: 16, 1>}]} {
    %c0 = arith.constant 0 : index
    %c0_0 = arith.constant 0 : index
    %0 = vector.load %arg1[%c0, %c0_0] : memref<16x32xbf16, #tpu.memory_space<vmem>>, vector<16x32xbf16>
    %c0_1 = arith.constant 0 : index
    %c0_2 = arith.constant 0 : index
    %1 = vector.load %arg2[%c0_1, %c0_2] : memref<32x256xbf16, #tpu.memory_space<vmem>>, vector<32x256xbf16>
    %cst = arith.constant dense<0.000000e+00> : vector<16x256xf32>
    %2 = tpu.matmul %0, %1, %cst {dimension_numbers = #tpu.dot_dimension_numbers<[1], [0], [0], [1], [0, 0, 1, 1], [], []>} : vector<16x32xbf16>, vector<32x256xbf16>, vector<16x256xf32> -> vector<16x256xf32>
    %c0_3 = arith.constant 0 : index
    %c0_4 = arith.constant 0 : index
    %3 = vector.load %arg3[%c0_3, %c0_4] : memref<1x256xf32, #tpu.memory_space<vmem>>, vector<1x256xf32>
    %4 = vector.broadcast %3 : vector<1x256xf32> to vector<16x256xf32>
    %5 = arith.addf %2, %4 : vector<16x256xf32>
    %cst_5 = arith.constant 0.000000e+00 : f32
    %6 = vector.broadcast %cst_5 : f32 to vector<16x256xf32>
    %7 = arith.maximumf %5, %6 : vector<16x256xf32>
    %8 = arith.truncf %7 : vector<16x256xf32> to vector<16x256xbf16>
    %c0_6 = arith.constant 0 : index
    %c0_7 = arith.constant 0 : index
    %9 = vector.load %arg4[%c0_6, %c0_7] : memref<256x256xbf16, #tpu.memory_space<vmem>>, vector<256x256xbf16>
    %cst_8 = arith.constant dense<0.000000e+00> : vector<16x256xf32>
    %10 = tpu.matmul %8, %9, %cst_8 {dimension_numbers = #tpu.dot_dimension_numbers<[1], [0], [0], [1], [0, 0, 1, 1], [], []>} : vector<16x256xbf16>, vector<256x256xbf16>, vector<16x256xf32> -> vector<16x256xf32>
    %c0_9 = arith.constant 0 : index
    %c0_10 = arith.constant 0 : index
    %11 = vector.load %arg5[%c0_9, %c0_10] : memref<1x256xf32, #tpu.memory_space<vmem>>, vector<1x256xf32>
    %12 = vector.broadcast %11 : vector<1x256xf32> to vector<16x256xf32>
    %13 = arith.addf %10, %12 : vector<16x256xf32>
    %cst_11 = arith.constant 0.000000e+00 : f32
    %14 = vector.broadcast %cst_11 : f32 to vector<16x256xf32>
    %15 = arith.maximumf %13, %14 : vector<16x256xf32>
    %c0_12 = arith.constant 0 : index
    %c0_13 = arith.constant 0 : index
    %16 = vector.load %arg6[%c0_12, %c0_13] : memref<1x256xf32, #tpu.memory_space<vmem>>, vector<1x256xf32>
    %17 = vector.broadcast %16 : vector<1x256xf32> to vector<16x256xf32>
    %18 = arith.mulf %15, %17 : vector<16x256xf32>
    %19 = vector.extract_strided_slice %18 {offsets = [0, 0], sizes = [16, 128], strides = [1, 1]} : vector<16x256xf32> to vector<16x128xf32>
    %20 = vector.extract_strided_slice %18 {offsets = [0, 128], sizes = [16, 128], strides = [1, 1]} : vector<16x256xf32> to vector<16x128xf32>
    %21 = arith.addf %19, %20 : vector<16x128xf32>
    %cst_14 = arith.constant dense<0.000000e+00> : vector<16xf32>
    %22 = vector.multi_reduction <add>, %21, %cst_14 [1] : vector<16x128xf32> to vector<16xf32>
    %23 = vector.shape_cast %22 : vector<16xf32> to vector<16x1xf32>
    %c0_15 = arith.constant 0 : index
    %c0_16 = arith.constant 0 : index
    %24 = memref.load %arg7[%c0_15, %c0_16] : memref<1x1xf32, #tpu.memory_space<smem>>
    %25 = vector.broadcast %24 : f32 to vector<16x1xf32>
    %26 = arith.addf %23, %25 : vector<16x1xf32>
    %c0_17 = arith.constant 0 : index
    %c0_18 = arith.constant 0 : index
    %27 = vector.load %arg8[%c0_17, %c0_18] : memref<16x1xf32, #tpu.memory_space<vmem>>, vector<16x1xf32>
    tpu.vector_store %arg8[%c0_17, %c0_18], %26 {strides = array<i32>} : memref<16x1xf32, #tpu.memory_space<vmem>>, vector<16x1xf32>,
    return
  }
  func.func @transform_0(%arg0: i32) -> (i32, i32) {
    %c0_i32 = arith.constant 0 : i32
    %c0_i32_0 = arith.constant 0 : i32
    return %arg0, %c0_i32 : i32, i32
  }
  func.func @transform_1(%arg0: i32) -> (i32, i32) {
    %c0_i32 = arith.constant 0 : i32
    %c0_i32_0 = arith.constant 0 : i32
    %c0_i32_1 = arith.constant 0 : i32
    return %c0_i32, %c0_i32_0 : i32, i32
  }
  func.func @transform_2(%arg0: i32) -> (i32, i32) {
    %c0_i32 = arith.constant 0 : i32
    %c0_i32_0 = arith.constant 0 : i32
    %c0_i32_1 = arith.constant 0 : i32
    return %c0_i32, %c0_i32_0 : i32, i32
  }
  func.func @transform_3(%arg0: i32) -> (i32, i32) {
    %c0_i32 = arith.constant 0 : i32
    %c0_i32_0 = arith.constant 0 : i32
    %c0_i32_1 = arith.constant 0 : i32
    return %c0_i32, %c0_i32_0 : i32, i32
  }
  func.func @transform_4(%arg0: i32) -> (i32, i32) {
    %c0_i32 = arith.constant 0 : i32
    %c0_i32_0 = arith.constant 0 : i32
    %c0_i32_1 = arith.constant 0 : i32
    return %c0_i32, %c0_i32_0 : i32, i32
  }
  func.func @transform_5(%arg0: i32) -> (i32, i32) {
    %c0_i32 = arith.constant 0 : i32
    %c0_i32_0 = arith.constant 0 : i32
    %c0_i32_1 = arith.constant 0 : i32
    return %c0_i32, %c0_i32_0 : i32, i32
  }
  func.func @transform_6(%arg0: i32) -> (i32, i32) {
    %c0_i32 = arith.constant 0 : i32
    %c0_i32_0 = arith.constant 0 : i32
    %c0_i32_1 = arith.constant 0 : i32
    return %c0_i32, %c0_i32_0 : i32, i32
  }
  func.func @transform_7(%arg0: i32) -> (i32, i32) {
    %c0_i32 = arith.constant 0 : i32
    %c0_i32_0 = arith.constant 0 : i32
    return %arg0, %c0_i32 : i32, i32
  }
}

</mosaic_0001>

<llo_original>
// kernel: tpu_custom_call.1
$region0: #{tpu_custom_call.1}
  #allocation0 [shape = 'u32[]', space=smem, size = 0x4, offset = 0x4, fixed_abs, tag = 'smem constant byte address 0x4 - core index']
  #allocation1 [shape = 'u32[144,128]{1,0:T(1,128)}', space=vmem, size = 0x12000, scoped, tag = 'internal scratch']
  #allocation2 [shape = 'f32[1,1]{1,0:T(1,128)S(6)}', space=smem, size = 0x200, scoped, tag = 'scoped memory for tpu_custom_call.1']
  %s0 = inlined_call_operand.hbm [shape: bf16[32,32], index: 0, kind: input, shape index: {}]
  %s1 = inlined_call_operand.hbm [shape: bf16[32,256], index: 1, kind: input, shape index: {}]
  %s2 = inlined_call_operand.vmem [shape: f32[1,256], index: 2, kind: input, shape index: {}]
  %s3 = inlined_call_operand.hbm [shape: bf16[256,256], index: 3, kind: input, shape index: {}]
  %s4 = inlined_call_operand.vmem [shape: f32[1,256], index: 4, kind: input, shape index: {}]
  %s5 = inlined_call_operand.vmem [shape: f32[1,256], index: 5, kind: input, shape index: {}]
  %s6 = inlined_call_operand.<no memory space> [shape: f32[1,1], index: 6, kind: input, shape index: {}]
  %s7 = inlined_call_operand.vmem [shape: f32[32,1], index: 7, kind: output, shape index: {}]
  %s8 = sld [smem:[#allocation0]]
  $region73: #{tpu_custom_call.1} parent=0
    _
  %s10 = ssub.s32 1, %s8
  %s11 = scalar_select 0, %s10, %s8
  %12 = sst [smem:[#allocation2]] %s6
  $region1: #{tpu_custom_call.1} parent=0
    #allocation3 [shape = 'u8[8192]{0}', space=vmem, size = 0x2000, scoped, tag = 'input window, operand 0']
    #allocation4 [shape = 's32[2]{0}', space=sflag, size = 0x8, scoped, tag = 'scoped memory for tpu_custom_call.1']
    #allocation5 [shape = 'u8[16384]{0}', space=vmem, size = 0x4000, scoped, tag = 'input window, operand 1, single buffered']
    #allocation6 [shape = 's32[1]{0}', space=sflag, size = 0x4, scoped, tag = 'scoped memory for tpu_custom_call.1']
    #allocation7 [shape = 'u8[131072]{0}', space=vmem, size = 0x20000, scoped, tag = 'input window, operand 3, single buffered']
    %13 = vsyncpa [#allocation4], 0
    %s14 = scalar_lea.sflag [#allocation4], 1
    %15 = vsyncpa %s14, 0
    %16 = vsyncpa [#allocation6], 0
    loop: start=0, step=1, limit=4
    $region2: #{tpu_custom_call.1} parent=1 // loop_pre_header
      _
    $region3: #{tpu_custom_call.1} parent=1 // loop_header
      %s18 = sphi 0, %s22
      %p19 = scmp.ge.s32.totalorder %s18, 4
      %s28 = sphi 0, %s30
      %s31 = sphi 0, %s28
      %s32 = sphi 0, %s31
      %s48 = sphi 0, %s32
      %s52 = sphi 0, %s52
      %s54 = sphi 0, %s52
      %s55 = sphi 0, %s54
      %s69 = sphi 0, %s55
      %s73 = sphi 0, %s73
      %s75 = sphi 0, %s73
      %s76 = sphi 0, %s75
      %s90 = sphi 0, %s76
      %s94 = sphi 0, %s94
      %s96 = sphi 0, %s94
      %s97 = sphi 0, %s96
      %s111 = sphi 0, %s97
      %s115 = sphi 0, %s115
      %s117 = sphi 0, %s115
      %s118 = sphi 0, %s117
      %s132 = sphi 0, %s118
      %s136 = sphi 0, %s136
      %s138 = sphi 0, %s136
      %s139 = sphi 0, %s138
      %s153 = sphi 0, %s139
      %s157 = sphi 0, %s157
      %s159 = sphi 0, %s157
      %s160 = sphi 0, %s159
      %s174 = sphi 0, %s160
      %s180 = sphi 0, %s182
      %s183 = sphi 0, %s180
      %s184 = sphi 0, %s183
      %s200 = sphi 0, %s184
    $region4: #{tpu_custom_call.1} parent=1 // loop_header_branch
      %21 = sbr.rel (%p19) target = $region8
    $region5: #{tpu_custom_call.1} parent=1 // loop_body
      %s23 = ssub.s32 %s18, 1
      %s24 = ssub.s32 %s18, 2
      %s25 = sadd.s32 %s18, 1
      %s26 = ssub.s32 %s18, %s25
      %p27 = scmp.eq.s32.totalorder %s26, 0
      %s29 = sadd.s32 %s28, 1
      %s30 = scalar_select %p27, %s28, %s29
      %p33 = pneg %p27
      %p34 = scmp.eq.s32.totalorder %s18, 1
      %p35 = por %p33, %p34
      %p36 = scmp.ne.s32.totalorder %s28, %s31
      %p37 = scmp.eq.s32.totalorder %s18, 0
      %p38 = por %p36, %p37
      %p39 = scmp.ne.s32.totalorder %s28, %s31
      %p40 = scmp.eq.s32.totalorder %s23, 1
      %p41 = por %p39, %p40
      %p42 = scmp.ne.s32.totalorder %s31, %s32
      %p43 = scmp.eq.s32.totalorder %s23, 0
      %p44 = por %p42, %p43
      %p45 = scmp.ne.s32.totalorder %s31, %s32
      %p46 = scmp.eq.s32.totalorder %s24, 1
      %p47 = por %p45, %p46
      %p49 = scmp.ne.s32.totalorder %s32, %s48
      %p50 = scmp.eq.s32.totalorder %s24, 0
      %p51 = por %p49, %p50
      %s53 = sadd.s32 %s52, 1
      %p56 = scmp.eq.s32.totalorder %s18, 1
      %p57 = scmp.ne.s32.totalorder %s52, %s54
      %p58 = scmp.eq.s32.totalorder %s18, 0
      %p59 = por %p57, %p58
      %p60 = scmp.ne.s32.totalorder %s52, %s54
      %p61 = scmp.eq.s32.totalorder %s23, 1
      %p62 = por %p60, %p61
      %p63 = scmp.ne.s32.totalorder %s54, %s55
      %p64 = scmp.eq.s32.totalorder %s23, 0
      %p65 = por %p63, %p64
      %p66 = scmp.ne.s32.totalorder %s54, %s55
      %p67 = scmp.eq.s32.totalorder %s24, 1
      %p68 = por %p66, %p67
      %p70 = scmp.ne.s32.totalorder %s55, %s69
      %p71 = scmp.eq.s32.totalorder %s24, 0
      %p72 = por %p70, %p71
      %s74 = sadd.s32 %s73, 1
      %p77 = scmp.eq.s32.totalorder %s18, 1
      %p78 = scmp.ne.s32.totalorder %s73, %s75
      %p79 = scmp.eq.s32.totalorder %s18, 0
      %p80 = por %p78, %p79
      %p81 = scmp.ne.s32.totalorder %s73, %s75
      %p82 = scmp.eq.s32.totalorder %s23, 1
      %p83 = por %p81, %p82
      %p84 = scmp.ne.s32.totalorder %s75, %s76
      %p85 = scmp.eq.s32.totalorder %s23, 0
      %p86 = por %p84, %p85
      %p87 = scmp.ne.s32.totalorder %s75, %s76
      %p88 = scmp.eq.s32.totalorder %s24, 1
      %p89 = por %p87, %p88
      %p91 = scmp.ne.s32.totalorder %s76, %s90
      %p92 = scmp.eq.s32.totalorder %s24, 0
      %p93 = por %p91, %p92
      %s95 = sadd.s32 %s94, 1
      %p98 = scmp.eq.s32.totalorder %s18, 1
      %p99 = scmp.ne.s32.totalorder %s94, %s96
      %p100 = scmp.eq.s32.totalorder %s18, 0
      %p101 = por %p99, %p100
      %p102 = scmp.ne.s32.totalorder %s94, %s96
      %p103 = scmp.eq.s32.totalorder %s23, 1
      %p104 = por %p102, %p103
      %p105 = scmp.ne.s32.totalorder %s96, %s97
      %p106 = scmp.eq.s32.totalorder %s23, 0
      %p107 = por %p105, %p106
      %p108 = scmp.ne.s32.totalorder %s96, %s97
      %p109 = scmp.eq.s32.totalorder %s24, 1
      %p110 = por %p108, %p109
      %p112 = scmp.ne.s32.totalorder %s97, %s111
      %p113 = scmp.eq.s32.totalorder %s24, 0
      %p114 = por %p112, %p113
      %s116 = sadd.s32 %s115, 1
      %p119 = scmp.eq.s32.totalorder %s18, 1
      %p120 = scmp.ne.s32.totalorder %s115, %s117
      %p121 = scmp.eq.s32.totalorder %s18, 0
      %p122 = por %p120, %p121
      %p123 = scmp.ne.s32.totalorder %s115, %s117
      %p124 = scmp.eq.s32.totalorder %s23, 1
      %p125 = por %p123, %p124
      %p126 = scmp.ne.s32.totalorder %s117, %s118
      %p127 = scmp.eq.s32.totalorder %s23, 0
      %p128 = por %p126, %p127
      %p129 = scmp.ne.s32.totalorder %s117, %s118
      %p130 = scmp.eq.s32.totalorder %s24, 1
      %p131 = por %p129, %p130
      %p133 = scmp.ne.s32.totalorder %s118, %s132
      %p134 = scmp.eq.s32.totalorder %s24, 0
      %p135 = por %p133, %p134
      %s137 = sadd.s32 %s136, 1
      %p140 = scmp.eq.s32.totalorder %s18, 1
      %p141 = scmp.ne.s32.totalorder %s136, %s138
      %p142 = scmp.eq.s32.totalorder %s18, 0
      %p143 = por %p141, %p142
      %p144 = scmp.ne.s32.totalorder %s136, %s138
      %p145 = scmp.eq.s32.totalorder %s23, 1
      %p146 = por %p144, %p145
      %p147 = scmp.ne.s32.totalorder %s138, %s139
      %p148 = scmp.eq.s32.totalorder %s23, 0
      %p149 = por %p147, %p148
      %p150 = scmp.ne.s32.totalorder %s138, %s139
      %p151 = scmp.eq.s32.totalorder %s24, 1
      %p152 = por %p150, %p151
      %p154 = scmp.ne.s32.totalorder %s139, %s153
      %p155 = scmp.eq.s32.totalorder %s24, 0
      %p156 = por %p154, %p155
      %s158 = sadd.s32 %s157, 1
      %p161 = scmp.eq.s32.totalorder %s18, 1
      %p162 = scmp.ne.s32.totalorder %s157, %s159
      %p163 = scmp.eq.s32.totalorder %s18, 0
      %p164 = por %p162, %p163
      %p165 = scmp.ne.s32.totalorder %s157, %s159
      %p166 = scmp.eq.s32.totalorder %s23, 1
      %p167 = por %p165, %p166
      %p168 = scmp.ne.s32.totalorder %s159, %s160
      %p169 = scmp.eq.s32.totalorder %s23, 0
      %p170 = por %p168, %p169
      %p171 = scmp.ne.s32.totalorder %s159, %s160
      %p172 = scmp.eq.s32.totalorder %s24, 1
      %p173 = por %p171, %p172
      %p175 = scmp.ne.s32.totalorder %s160, %s174
      %p176 = scmp.eq.s32.totalorder %s24, 0
      %p177 = por %p175, %p176
      %s178 = ssub.s32 %s18, %s25
      %p179 = scmp.eq.s32.totalorder %s178, 0
      %s181 = sadd.s32 %s180, 1
      %s182 = scalar_select %p179, %s180, %s181
      %p185 = pneg %p179
      %p186 = scmp.eq.s32.totalorder %s18, 1
      %p187 = por %p185, %p186
      %p188 = scmp.ne.s32.totalorder %s180, %s183
      %p189 = scmp.eq.s32.totalorder %s18, 0
      %p190 = por %p188, %p189
      %p191 = scmp.ne.s32.totalorder %s180, %s183
      %p192 = scmp.eq.s32.totalorder %s23, 1
      %p193 = por %p191, %p192
      %p194 = scmp.ne.s32.totalorder %s183, %s184
      %p195 = scmp.eq.s32.totalorder %s23, 0
      %p196 = por %p194, %p195
      %p197 = scmp.ne.s32.totalorder %s183, %s184
      %p198 = scmp.eq.s32.totalorder %s24, 1
      %p199 = por %p197, %p198
      %p201 = scmp.ne.s32.totalorder %s184, %s200
      %p202 = scmp.eq.s32.totalorder %s24, 0
      %p203 = por %p201, %p202
      %p204 = scmp.le.s32.totalorder 1, %s18
      %p205 = scmp.lt.s32.totalorder %s18, 3
      %p206 = pnand %p204, %p205
      %p207 = pneg %p206
      // Predicated region
      $region9: #{tpu_custom_call.1} parent=5 // pred_check
        _
      $region10: #{tpu_custom_call.1} parent=5 // pred_check_branch
        %209 = sbr.rel (%p206) target = $region12
      $region11: #{tpu_custom_call.1} parent=5 // pred_region
        %s210 = ssub.s32 %s18, 1
        // Predicated region
        $region13: #{tpu_custom_call.1} parent=11 // pred_check
          %p211 = pneg %p65
        $region14: #{tpu_custom_call.1} parent=11 // pred_check_branch
          %213 = sbr.rel (%p211) target = $region16
        $region15: #{tpu_custom_call.1} parent=11 // pred_region
          %s215 = ssub.s32 512, 512
          %216 = vsyncadd [#allocation6], %s215
          %s217 = sshll.u32 [#allocation5], 4
          %s218 = int_to_ptr.vmem [resolvable:$true] %s217
          %223 = dma.hbm_to_vmem [thread:$0]  %s1, 512, %s218, [#allocation6], 128, 128, 8
        $region16: #{tpu_custom_call.1} parent=11 // pred_fallthru
          _
        // Predicated region
        $region17: #{tpu_custom_call.1} parent=11 // pred_check
          %p224 = pneg %p86
        $region18: #{tpu_custom_call.1} parent=11 // pred_check_branch
          %226 = sbr.rel (%p224) target = $region20
        $region19: #{tpu_custom_call.1} parent=11 // pred_region
          _
        $region20: #{tpu_custom_call.1} parent=11 // pred_fallthru
          _
        // Predicated region
        $region21: #{tpu_custom_call.1} parent=11 // pred_check
          %p227 = pneg %p107
        $region22: #{tpu_custom_call.1} parent=11 // pred_check_branch
          %229 = sbr.rel (%p227) target = $region24
        $region23: #{tpu_custom_call.1} parent=11 // pred_region
          %s231 = ssub.s32 4096, 4096
          %232 = vsyncadd [#allocation6], %s231
          %s233 = sshll.u32 [#allocation7], 4
          %s234 = int_to_ptr.vmem [resolvable:$true] %s233
          %239 = dma.hbm_to_vmem [thread:$0]  %s3, 4096, %s234, [#allocation6], 128, 128, 8
        $region24: #{tpu_custom_call.1} parent=11 // pred_fallthru
          _
        // Predicated region
        $region25: #{tpu_custom_call.1} parent=11 // pred_check
          %p240 = pneg %p128
        $region26: #{tpu_custom_call.1} parent=11 // pred_check_branch
          %242 = sbr.rel (%p240) target = $region28
        $region27: #{tpu_custom_call.1} parent=11 // pred_region
          _
        $region28: #{tpu_custom_call.1} parent=11 // pred_fallthru
          _
        // Predicated region
        $region29: #{tpu_custom_call.1} parent=11 // pred_check
          %p243 = pneg %p149
        $region30: #{tpu_custom_call.1} parent=11 // pred_check_branch
          %245 = sbr.rel (%p243) target = $region32
        $region31: #{tpu_custom_call.1} parent=11 // pred_region
          _
        $region32: #{tpu_custom_call.1} parent=11 // pred_fallthru
          _
        // Predicated region
        $region33: #{tpu_custom_call.1} parent=11 // pred_check
          %p246 = pneg %p170
        $region34: #{tpu_custom_call.1} parent=11 // pred_check_branch
          %248 = sbr.rel (%p246) target = $region36
        $region35: #{tpu_custom_call.1} parent=11 // pred_region
          _
        $region36: #{tpu_custom_call.1} parent=11 // pred_fallthru
          _
      $region12: #{tpu_custom_call.1} parent=5 // pred_fallthru
        _
      %p249 = scmp.lt.s32.totalorder %s18, 2
      // Predicated region
      $region37: #{tpu_custom_call.1} parent=5 // pred_check
        %p250 = pneg %p249
      $region38: #{tpu_custom_call.1} parent=5 // pred_check_branch
        %252 = sbr.rel (%p250) target = $region40
      $region39: #{tpu_custom_call.1} parent=5 // pred_region
        // Predicated region
        $region41: #{tpu_custom_call.1} parent=39 // pred_check
          %p253 = pneg %p38
        $region42: #{tpu_custom_call.1} parent=39 // pred_check_branch
          %255 = sbr.rel (%p253) target = $region44
        $region43: #{tpu_custom_call.1} parent=39 // pred_region
          %s256 = sand.u32 %s28, 1
          %s257 = scalar_lea.sflag [#allocation4], %s256
          %s258 = sand.u32 %s28, 1
          %s259 = smul.addr %s258, 8
          %s260 = scalar_lea.vmem [#allocation3], %s259
          %s261 = smul.u32 2, %s18
          %s263 = ssub.s32 128, 128
          %264 = vsyncadd %s257, %s263
          %s265 = smul.addr %s261, 64
          %s266 = scalar_lea.hbm %s0, %s265
          %s267 = sshll.u32 %s260, 4
          %s268 = int_to_ptr.vmem [resolvable:$true] %s267
          %273 = dma.hbm_to_vmem [thread:$0]  %s266, 128, %s268, %s257, 64, 64, 4
        $region44: #{tpu_custom_call.1} parent=39 // pred_fallthru
          _
      $region40: #{tpu_custom_call.1} parent=5 // pred_fallthru
        _
      %p274 = scmp.le.s32.totalorder 1, %s18
      %p275 = scmp.lt.s32.totalorder %s18, 3
      %p276 = pnand %p274, %p275
      %p277 = pneg %p276
      // Predicated region
      $region45: #{tpu_custom_call.1} parent=5 // pred_check
        _
      $region46: #{tpu_custom_call.1} parent=5 // pred_check_branch
        %279 = sbr.rel (%p276) target = $region48
      $region47: #{tpu_custom_call.1} parent=5 // pred_region
        %s280 = ssub.s32 %s18, 1
        %s281 = sand.u32 %s31, 1
        %s282 = scalar_lea.sflag [#allocation4], %s281
        %s283 = sand.u32 %s31, 1
        %s284 = smul.addr %s283, 8
        %s285 = scalar_lea.vmem [#allocation3], %s284
        // Predicated region
        $region49: #{tpu_custom_call.1} parent=47 // pred_check
          %p286 = pneg %p44
        $region50: #{tpu_custom_call.1} parent=47 // pred_check_branch
          %288 = sbr.rel (%p286) target = $region52
        $region51: #{tpu_custom_call.1} parent=47 // pred_region
          %289 = dma.done %s282, 128
        $region52: #{tpu_custom_call.1} parent=47 // pred_fallthru
          _
        // Predicated region
        $region53: #{tpu_custom_call.1} parent=47 // pred_check
          %p290 = pneg %p65
        $region54: #{tpu_custom_call.1} parent=47 // pred_check_branch
          %292 = sbr.rel (%p290) target = $region56
        $region55: #{tpu_custom_call.1} parent=47 // pred_region
          %293 = dma.done [#allocation6], 512
        $region56: #{tpu_custom_call.1} parent=47 // pred_fallthru
          _
        // Predicated region
        $region57: #{tpu_custom_call.1} parent=47 // pred_check
          %p294 = pneg %p107
        $region58: #{tpu_custom_call.1} parent=47 // pred_check_branch
          %296 = sbr.rel (%p294) target = $region60
        $region59: #{tpu_custom_call.1} parent=47 // pred_region
          %297 = dma.done [#allocation6], 4096
        $region60: #{tpu_custom_call.1} parent=47 // pred_fallthru
          _
        %s298 = sand.u32 %s31, 1
        %s299 = scalar_lea.sflag [#allocation4], %s298
        %s300 = sand.u32 %s31, 1
        %s301 = smul.addr %s300, 8
        %s302 = scalar_lea.vmem [#allocation3], %s301
        %p303 = pneg %p44
        %p304 = pneg %p41
        %p305 = pneg %p65
        %p306 = pneg %p62
        %p307 = pneg %p86
        %p308 = pneg %p83
        %p309 = pneg %p107
        %p310 = pneg %p104
        %p311 = pneg %p128
        %p312 = pneg %p125
        %p313 = pneg %p149
        %p314 = pneg %p146
        %p315 = pneg %p170
        %p316 = pneg %p167
        %p317 = pneg %p196
        %p318 = pneg %p193
        %s319 = smul.u32 2, %s23
        %p320 = scmp.lt.s32.totalorder %s319, 3
        %s321 = scalar_select %p320, %s319, 3
        %s322 = smul.addr %s321, 8
        %s323 = scalar_lea.vmem %s7, %s322
        %s324 = smul.u32 2, %s23
        %s325 = smul.u32 2, %s23
        %p326 = scmp.lt.s32.totalorder %s325, 3
        %s327 = scalar_select %p326, %s325, 3
        %s328 = smul.addr %s327, 8
        %s329 = scalar_lea.vmem %s7, %s328
        %s330 = smul.u32 2, %s23
        %v332 = vld [vmem:[%s285] sm:$0xf]
        %v333 = vld [vmem:[%s285 + $0x4] sm:$0xf]
        %v334 = vld [vmem:[#allocation5] sm:$0xff]
        %v335 = vld [vmem:[#allocation5 + $0x8] sm:$0xff]
        %v336 = vld [vmem:[#allocation5 + $0x10] sm:$0xff]
        %v337 = vld [vmem:[#allocation5 + $0x18] sm:$0xff]
        %v338 = vld [vmem:[%s2] sm:$0x3]
        %v340 = vlaneseq
        %v341 = vshrl.u32 %v340, 7
        %v342 = vsub.s32 0, %v341
        %v343 = vrot.slane %v338, %v342
        %v344 = vlaneseq
        %v345 = vshrl.u32 %v344, 7
        %v346 = vsub.s32 1, %v345
        %v347 = vrot.slane %v338, %v346
        %v352 = vunpack.c.l.b16 %v332
        %v353 = vunpack.c.l.b16 %v333
        %v354 = vpack.c.b16 %v353, %v352
        %v359 = vunpack.c.l.b16 %v334
        %v360 = vunpack.c.h.b16 %v334
        %v361 = vunpack.c.l.b16 %v335
        %v362 = vunpack.c.h.b16 %v335
        %v363 = vunpack.c.l.b16 %v336
        %v364 = vunpack.c.h.b16 %v336
        %v365 = vunpack.c.l.b16 %v337
        %v366 = vunpack.c.h.b16 %v337
        %v367 = vpack.c.b16 %v361, %v359
        %v368 = vpack.c.b16 %v362, %v360
        %v369 = vpack.c.b16 %v365, %v363
        %v370 = vpack.c.b16 %v366, %v364
        %vm375 = vcmask 261120
        %v377 = vsel %vm375, %v354, 0
        %379 = vmatprep.subr.bf16.mxu0 %v368
        %380 = vmatpush1.bf16.msra.mxu0 %v367
        %381 = vmatprep.subr.bf16.mxu0 %v370
        %382 = vmatpush1.bf16.msra.mxu0 %v369
        %383 = vmatprep.subr.bf16.mxu0 0
        %384 = vmatpush1.bf16.msra.mxu0 0
        %385 = vmatprep.subr.bf16.mxu0 0
        %386 = vmatpush1.bf16.msra.mxu0 0
        %387 = vmatprep.subr.bf16.mxu0 0
        %388 = vmatpush1.bf16.msra.mxu0 0
        %389 = vmatprep.subr.bf16.mxu0 0
        %390 = vmatpush1.bf16.msra.mxu0 0
        %391 = vmatprep.subr.bf16.mxu0 0
        %392 = vmatpush1.bf16.msra.mxu0 0
        %393 = vmatprep.subr.bf16.mxu0 0
        %394 = vmatpush1.bf16.msra.mxu0 0
        %395 = vmatprep.subr.bf16.mxu0 0
        %396 = vmatpush1.bf16.msra.mxu0 0
        %397 = vmatprep.subr.bf16.mxu0 0
        %398 = vmatpush1.bf16.msra.mxu0 0
        %399 = vmatprep.subr.bf16.mxu0 0
        %400 = vmatpush1.bf16.msra.mxu0 0
        %401 = vmatprep.subr.bf16.mxu0 0
        %402 = vmatpush1.bf16.msra.mxu0 0
        %403 = vmatprep.subr.bf16.mxu0 0
        %404 = vmatpush1.bf16.msra.mxu0 0
        %405 = vmatprep.subr.bf16.mxu0 0
        %406 = vmatpush1.bf16.msra.mxu0 0
        %407 = vmatprep.subr.bf16.mxu0 0
        %408 = vmatpush1.bf16.msra.mxu0 0
        %409 = vmatprep.subr.bf16.mxu0 0
        %410 = vmatpush1.bf16.msra.mxu0 0
        %411 = vmatprep.mubr.bf16.mxu0 0
        %412 = vmatmul.mubr.bf16.gmra.mrb[0].mxu0 %v377
        %v413 = vpop.f32.mrb[0].mxu0
        %v414 = vadd.f32 %v343, %v413
        %v415 = vpop.f32.mrb[0].mxu0
        %v416 = vadd.f32 %v347, %v415
        %v417 = vpop.f32.mrb[0].mxu0
        %v418 = vadd.f32 %v343, %v417
        %v419 = vpop.f32.mrb[0].mxu0
        %v420 = vadd.f32 %v347, %v419
        %421 = vdwg.mxu0
        %v422 = vmax.f32 %v414, 0.0
        %v423 = vmax.f32 %v416, 0.0
        %v424 = vmax.f32 %v418, 0.0
        %v425 = vmax.f32 %v420, 0.0
        %v426 = vpack.c.bf16 %v424, %v422
        %v427 = vpack.c.bf16 %v425, %v423
        %v428 = vld [vmem:[#allocation7] sm:$0xff]
        %v429 = vld [vmem:[#allocation7 + $0x8] sm:$0xff]
        %v430 = vld [vmem:[#allocation7 + $0x10] sm:$0xff]
        %v431 = vld [vmem:[#allocation7 + $0x18] sm:$0xff]
        %v432 = vld [vmem:[#allocation7 + $0x20] sm:$0xff]
        %v433 = vld [vmem:[#allocation7 + $0x28] sm:$0xff]
        %v434 = vld [vmem:[#allocation7 + $0x30] sm:$0xff]
        %v435 = vld [vmem:[#allocation7 + $0x38] sm:$0xff]
        %v436 = vld [vmem:[#allocation7 + $0x40] sm:$0xff]
        %v437 = vld [vmem:[#allocation7 + $0x48] sm:$0xff]
        %v438 = vld [vmem:[#allocation7 + $0x50] sm:$0xff]
        %v439 = vld [vmem:[#allocation7 + $0x58] sm:$0xff]
        %v440 = vld [vmem:[#allocation7 + $0x60] sm:$0xff]
        %v441 = vld [vmem:[#allocation7 + $0x68] sm:$0xff]
        %v442 = vld [vmem:[#allocation7 + $0x70] sm:$0xff]
        %v443 = vld [vmem:[#allocation7 + $0x78] sm:$0xff]
        %v444 = vld [vmem:[#allocation7 + $0x80] sm:$0xff]
        %v445 = vld [vmem:[#allocation7 + $0x88] sm:$0xff]
        %v446 = vld [vmem:[#allocation7 + $0x90] sm:$0xff]
        %v447 = vld [vmem:[#allocation7 + $0x98] sm:$0xff]
        %v448 = vld [vmem:[#allocation7 + $0xa0] sm:$0xff]
        %v449 = vld [vmem:[#allocation7 + $0xa8] sm:$0xff]
        %v450 = vld [vmem:[#allocation7 + $0xb0] sm:$0xff]
        %v451 = vld [vmem:[#allocation7 + $0xb8] sm:$0xff]
        %v452 = vld [vmem:[#allocation7 + $0xc0] sm:$0xff]
        %v453 = vld [vmem:[#allocation7 + $0xc8] sm:$0xff]
        %v454 = vld [vmem:[#allocation7 + $0xd0] sm:$0xff]
        %v455 = vld [vmem:[#allocation7 + $0xd8] sm:$0xff]
        %v456 = vld [vmem:[#allocation7 + $0xe0] sm:$0xff]
        %v457 = vld [vmem:[#allocation7 + $0xe8] sm:$0xff]
        %v458 = vld [vmem:[#allocation7 + $0xf0] sm:$0xff]
        %v459 = vld [vmem:[#allocation7 + $0xf8] sm:$0xff]
        %v460 = vld [vmem:[%s4] sm:$0x3]
        %v462 = vlaneseq
        %v463 = vshrl.u32 %v462, 7
        %v464 = vsub.s32 0, %v463
        %v465 = vrot.slane %v460, %v464
        %v466 = vlaneseq
        %v467 = vshrl.u32 %v466, 7
        %v468 = vsub.s32 1, %v467
        %v469 = vrot.slane %v460, %v468
        %v504 = vunpack.c.l.b16 %v428
        %v505 = vunpack.c.h.b16 %v428
        %v506 = vunpack.c.l.b16 %v429
        %v507 = vunpack.c.h.b16 %v429
        %v508 = vunpack.c.l.b16 %v430
        %v509 = vunpack.c.h.b16 %v430
        %v510 = vunpack.c.l.b16 %v431
        %v511 = vunpack.c.h.b16 %v431
        %v512 = vunpack.c.l.b16 %v432
        %v513 = vunpack.c.h.b16 %v432
        %v514 = vunpack.c.l.b16 %v433
        %v515 = vunpack.c.h.b16 %v433
        %v516 = vunpack.c.l.b16 %v434
        %v517 = vunpack.c.h.b16 %v434
        %v518 = vunpack.c.l.b16 %v435
        %v519 = vunpack.c.h.b16 %v435
        %v520 = vunpack.c.l.b16 %v436
        %v521 = vunpack.c.h.b16 %v436
        %v522 = vunpack.c.l.b16 %v437
        %v523 = vunpack.c.h.b16 %v437
        %v524 = vunpack.c.l.b16 %v438
        %v525 = vunpack.c.h.b16 %v438
        %v526 = vunpack.c.l.b16 %v439
        %v527 = vunpack.c.h.b16 %v439
        %v528 = vunpack.c.l.b16 %v440
        %v529 = vunpack.c.h.b16 %v440
        %v530 = vunpack.c.l.b16 %v441
        %v531 = vunpack.c.h.b16 %v441
        %v532 = vunpack.c.l.b16 %v442
        %v533 = vunpack.c.h.b16 %v442
        %v534 = vunpack.c.l.b16 %v443
        %v535 = vunpack.c.h.b16 %v443
        %v536 = vunpack.c.l.b16 %v444
        %v537 = vunpack.c.h.b16 %v444
        %v538 = vunpack.c.l.b16 %v445
        %v539 = vunpack.c.h.b16 %v445
        %v540 = vunpack.c.l.b16 %v446
        %v541 = vunpack.c.h.b16 %v446
        %v542 = vunpack.c.l.b16 %v447
        %v543 = vunpack.c.h.b16 %v447
        %v544 = vunpack.c.l.b16 %v448
        %v545 = vunpack.c.h.b16 %v448
        %v546 = vunpack.c.l.b16 %v449
        %v547 = vunpack.c.h.b16 %v449
        %v548 = vunpack.c.l.b16 %v450
        %v549 = vunpack.c.h.b16 %v450
        %v550 = vunpack.c.l.b16 %v451
        %v551 = vunpack.c.h.b16 %v451
        %v552 = vunpack.c.l.b16 %v452
        %v553 = vunpack.c.h.b16 %v452
        %v554 = vunpack.c.l.b16 %v453
        %v555 = vunpack.c.h.b16 %v453
        %v556 = vunpack.c.l.b16 %v454
        %v557 = vunpack.c.h.b16 %v454
        %v558 = vunpack.c.l.b16 %v455
        %v559 = vunpack.c.h.b16 %v455
        %v560 = vunpack.c.l.b16 %v456
        %v561 = vunpack.c.h.b16 %v456
        %v562 = vunpack.c.l.b16 %v457
        %v563 = vunpack.c.h.b16 %v457
        %v564 = vunpack.c.l.b16 %v458
        %v565 = vunpack.c.h.b16 %v458
        %v566 = vunpack.c.l.b16 %v459
        %v567 = vunpack.c.h.b16 %v459
        %v568 = vpack.c.b16 %v506, %v504
        %v569 = vpack.c.b16 %v507, %v505
        %v570 = vpack.c.b16 %v510, %v508
        %v571 = vpack.c.b16 %v511, %v509
        %v572 = vpack.c.b16 %v514, %v512
        %v573 = vpack.c.b16 %v515, %v513
        %v574 = vpack.c.b16 %v518, %v516
        %v575 = vpack.c.b16 %v519, %v517
        %v576 = vpack.c.b16 %v522, %v520
        %v577 = vpack.c.b16 %v523, %v521
        %v578 = vpack.c.b16 %v526, %v524
        %v579 = vpack.c.b16 %v527, %v525
        %v580 = vpack.c.b16 %v530, %v528
        %v581 = vpack.c.b16 %v531, %v529
        %v582 = vpack.c.b16 %v534, %v532
        %v583 = vpack.c.b16 %v535, %v533
        %v584 = vpack.c.b16 %v538, %v536
        %v585 = vpack.c.b16 %v539, %v537
        %v586 = vpack.c.b16 %v542, %v540
        %v587 = vpack.c.b16 %v543, %v541
        %v588 = vpack.c.b16 %v546, %v544
        %v589 = vpack.c.b16 %v547, %v545
        %v590 = vpack.c.b16 %v550, %v548
        %v591 = vpack.c.b16 %v551, %v549
        %v592 = vpack.c.b16 %v554, %v552
        %v593 = vpack.c.b16 %v555, %v553
        %v594 = vpack.c.b16 %v558, %v556
        %v595 = vpack.c.b16 %v559, %v557
        %v596 = vpack.c.b16 %v562, %v560
        %v597 = vpack.c.b16 %v563, %v561
        %v598 = vpack.c.b16 %v566, %v564
        %v599 = vpack.c.b16 %v567, %v565
        %632 = vmatprep.subr.bf16.mxu0 %v569
        %633 = vmatpush1.bf16.msra.mxu0 %v568
        %634 = vmatprep.subr.bf16.mxu0 %v571
        %635 = vmatpush1.bf16.msra.mxu0 %v570
        %636 = vmatprep.subr.bf16.mxu0 %v573
        %637 = vmatpush1.bf16.msra.mxu0 %v572
        %638 = vmatprep.subr.bf16.mxu0 %v575
        %639 = vmatpush1.bf16.msra.mxu0 %v574
        %640 = vmatprep.subr.bf16.mxu0 %v577
        %641 = vmatpush1.bf16.msra.mxu0 %v576
        %642 = vmatprep.subr.bf16.mxu0 %v579
        %643 = vmatpush1.bf16.msra.mxu0 %v578
        %644 = vmatprep.subr.bf16.mxu0 %v581
        %645 = vmatpush1.bf16.msra.mxu0 %v580
        %646 = vmatprep.subr.bf16.mxu0 %v583
        %647 = vmatpush1.bf16.msra.mxu0 %v582
        %648 = vmatprep.subr.bf16.mxu0 %v585
        %649 = vmatpush1.bf16.msra.mxu0 %v584
        %650 = vmatprep.subr.bf16.mxu0 %v587
        %651 = vmatpush1.bf16.msra.mxu0 %v586
        %652 = vmatprep.subr.bf16.mxu0 %v589
        %653 = vmatpush1.bf16.msra.mxu0 %v588
        %654 = vmatprep.subr.bf16.mxu0 %v591
        %655 = vmatpush1.bf16.msra.mxu0 %v590
        %656 = vmatprep.subr.bf16.mxu0 %v593
        %657 = vmatpush1.bf16.msra.mxu0 %v592
        %658 = vmatprep.subr.bf16.mxu0 %v595
        %659 = vmatpush1.bf16.msra.mxu0 %v594
        %660 = vmatprep.subr.bf16.mxu0 %v597
        %661 = vmatpush1.bf16.msra.mxu0 %v596
        %662 = vmatprep.subr.bf16.mxu0 %v599
        %663 = vmatpush1.bf16.msra.mxu0 %v598
        %664 = vmatprep.mubr.bf16.mxu0 %v427
        %665 = vmatmul.mubr.bf16.gmra.mrb[0].mxu0 %v426
        %v666 = vpop.f32.mrb[0].mxu0
        %v667 = vadd.f32 %v465, %v666
        %v668 = vpop.f32.mrb[0].mxu0
        %v669 = vadd.f32 %v469, %v668
        %v670 = vpop.f32.mrb[0].mxu0
        %v671 = vadd.f32 %v465, %v670
        %v672 = vpop.f32.mrb[0].mxu0
        %v673 = vadd.f32 %v469, %v672
        %674 = vdwg.mxu0
        %v675 = vmax.f32 %v667, 0.0
        %v676 = vmax.f32 %v669, 0.0
        %v677 = vmax.f32 %v671, 0.0
        %v678 = vmax.f32 %v673, 0.0
        %v679 = vld [vmem:[%s5] sm:$0x3]
        %v681 = vlaneseq
        %v682 = vshrl.u32 %v681, 7
        %v683 = vsub.s32 0, %v682
        %v684 = vrot.slane %v679, %v683
        %v685 = vlaneseq
        %v686 = vshrl.u32 %v685, 7
        %v687 = vsub.s32 1, %v686
        %v688 = vrot.slane %v679, %v687
        %v691 = vmul.f32 %v675, %v684
        %v692 = vmul.f32 %v676, %v688
        %v693 = vmul.f32 %v677, %v684
        %v694 = vmul.f32 %v678, %v688
        %v695 = vadd.f32 %v691, %v692
        %v696 = vadd.f32 %v693, %v694
        %697 = vadd.xlane.f32.xlu0 %v695
        %v698 = vpop.xlane.xlu0 %697
        %699 = vadd.xlane.f32.xlu0 %v696
        %v700 = vpop.xlane.xlu0 %699
        %s701 = sld [smem:[#allocation2]]
        %v702 = vstv %s701
        %v703 = vadd.f32 %v698, %v702
        %v704 = vadd.f32 %v700, %v702
        %vm705 = vcmask 7168
        %706 = vst.msk [vmem:[%s329] sm:$0xff] %vm705, %v703
        %707 = vst.msk [vmem:[%s329 + $0x8] sm:$0xff] %vm705, %v704
        %s708 = smul.u32 2, %s23
        %p709 = scmp.lt.s32.totalorder %s708, 3
        %s710 = scalar_select %p709, %s708, 3
        %s711 = smul.addr %s710, 8
        %s712 = scalar_lea.vmem %s7, %s711
        // Predicated region
        $region61: #{tpu_custom_call.1} parent=47 // pred_check
          %p713 = pneg %p193
        $region62: #{tpu_custom_call.1} parent=47 // pred_check_branch
          %715 = sbr.rel (%p713) target = $region64
        $region63: #{tpu_custom_call.1} parent=47 // pred_region
          %s716 = smul.u32 2, %s23
        $region64: #{tpu_custom_call.1} parent=47 // pred_fallthru
          _
      $region48: #{tpu_custom_call.1} parent=5 // pred_fallthru
        _
      %p717 = scmp.le.s32.totalorder 2, %s18
      // Predicated region
      $region65: #{tpu_custom_call.1} parent=5 // pred_check
        %p718 = pneg %p717
      $region66: #{tpu_custom_call.1} parent=5 // pred_check_branch
        %720 = sbr.rel (%p718) target = $region68
      $region67: #{tpu_custom_call.1} parent=5 // pred_region
        %s721 = ssub.s32 %s18, 2
        // Predicated region
        $region69: #{tpu_custom_call.1} parent=67 // pred_check
          %p722 = pneg %p199
        $region70: #{tpu_custom_call.1} parent=67 // pred_check_branch
          %724 = sbr.rel (%p722) target = $region72
        $region71: #{tpu_custom_call.1} parent=67 // pred_region
          %s725 = smul.u32 2, %s24
          %p726 = scmp.lt.s32.totalorder %s725, 3
          %s727 = scalar_select %p726, %s725, 3
          %s728 = smul.addr %s727, 8
          %s729 = scalar_lea.vmem %s7, %s728
        $region72: #{tpu_custom_call.1} parent=67 // pred_fallthru
          _
      $region68: #{tpu_custom_call.1} parent=5 // pred_fallthru
        _
    $region6: #{tpu_custom_call.1} parent=1 // loop_footer
      %s22 = sadd.s32 1, %s18
    $region7: #{tpu_custom_call.1} parent=1 // loop_footer_branch
      %17 = sbr.rel target = $region3
    $region8: #{tpu_custom_call.1} parent=1 // loop_exit
      _
    %730 = vsyncpa [#allocation4], 1
    %s731 = scalar_lea.sflag [#allocation4], 1
    %732 = vsyncpa %s731, 1
    %733 = vsyncpa [#allocation6], 1

</llo_original>
